<compile_context>
chip_gen: v6e
topology: v6e:2x2x1
jax: 0.10.0
libtpu: 0.0.40
codegen_flags: <defaults>
</compile_context>

<pallas_src>
import jax
import jax.numpy as jnp
from jax.experimental import pallas as pl
from jax.experimental.pallas import tpu as pltpu

_LANE = 128
_SUBLANE = 8


def _round_up(x, m):
    return ((x + m - 1) // m) * m


def _gather_concat_kernel(idx_ref, w_ref, out_ref):
    """One batch tile of the one-hot-matmul gather + concat.

    idx_ref: (TB, N) int32 — indices, pre-offset into the combined row space.
    w_ref:   (R_pad, OW)   — block-diagonal stacked embedding tables (VMEM).
    out_ref: (TB, OW)      — concatenated (lane-padded) embeddings for this tile.
    """
    tb = out_ref.shape[0]
    r = w_ref.shape[0]
    n = idx_ref.shape[1]

    # Multi-hot selector: OR-chain of compares + a single cast (fewer VALU slab
    # ops / live f32 temporaries than n casts + n-1 adds).
    cols = jax.lax.broadcasted_iota(jnp.int32, (tb, r), 1)
    hit = cols == idx_ref[:, 0:1]
    for k in range(1, n):  # static unroll, n is 3 or 4
        hit = hit | (cols == idx_ref[:, k:k + 1])
    multihot = hit.astype(w_ref.dtype)

    # Single MXU matmul produces the full concatenated slab; HIGHEST precision
    # keeps the one-hot gather exact for f32 tables. One lane-dense store.
    out_ref[...] = jnp.dot(
        multihot, w_ref[...],
        preferred_element_type=jnp.float32,
        precision=jax.lax.Precision.HIGHEST,
    ).astype(out_ref.dtype)


def pack_embedding_tables(tables):
    """Build the constant block-diagonal W once (module init, not per call)."""
    n = len(tables)
    d = int(tables[0].shape[1])
    dtype = jnp.result_type(*[t.dtype for t in tables])
    row_counts = [int(t.shape[0]) for t in tables]
    offsets = [0]
    for rc in row_counts[:-1]:
        offsets.append(offsets[-1] + rc)

    r_pad = _round_up(sum(row_counts), _LANE)   # lane-dense K for the MXU
    out_width = _round_up(n * d, _LANE)         # lane-dense output width

    w = jnp.zeros((r_pad, out_width), dtype)
    for k, (t, off) in enumerate(zip(tables, offsets)):
        w = w.at[off:off + t.shape[0], k * d:(k + 1) * d].set(t.astype(dtype))
    return dict(w=w, offsets=tuple(offsets), row_counts=tuple(row_counts),
                n=n, d=d, out_width=out_width, dtype=dtype)


def embedding_concat_forward_packed(packed, indices, *, batch_tile=2048):
    """out[b] = concat_k tables[k][indices[k][b]], using the pre-packed W."""
    n, d = packed["n"], packed["d"]
    w = packed["w"]
    offsets = packed["offsets"]
    row_counts = packed["row_counts"]
    out_width = packed["out_width"]
    dtype = packed["dtype"]
    assert len(indices) == n
    B = int(indices[0].shape[0])

    # Clamp each index into its own table, then offset into the combined rows.
    idx = jnp.stack(
        [jnp.clip(ix.astype(jnp.int32), 0, rc - 1) + off
         for ix, rc, off in zip(indices, row_counts, offsets)],
        axis=1)

    # Balanced batch tiles: never round up a whole extra tile of padding.
    n_tiles = max(1, -(-B // batch_tile))                 # cdiv
    tb = _round_up(-(-B // n_tiles), _SUBLANE)
    b_pad = _round_up(B, tb)
    if b_pad != B:
        # Padded rows use index 0 (a valid row); their output is sliced off.
        idx = jnp.pad(idx, ((0, b_pad - B), (0, 0)))

    r_pad = int(w.shape[0])
    out = pl.pallas_call(
        _gather_concat_kernel,
        out_shape=jax.ShapeDtypeStruct((b_pad, out_width), dtype),
        grid=(b_pad // tb,),
        in_specs=[
            pl.BlockSpec((tb, n), lambda i: (i, 0)),             # packed indices
            pl.BlockSpec((r_pad, out_width), lambda i: (0, 0)),  # resident W
        ],
        out_specs=pl.BlockSpec((tb, out_width), lambda i: (i, 0)),
        compiler_params=pltpu.CompilerParams(
            dimension_semantics=("parallel",),
            vmem_limit_bytes=32 << 20,
        ),
    )(idx, w)

    return out[:B, :n * d]


class UserEmbedding:
    """Pallas equivalent of the PyTorch `user` module."""

    def __init__(self, emb_gender, emb_age, emb_occupation, emb_area,
                 *, remove_gender=False, batch_tile=2048):
        self.remove_gender = remove_gender
        self.batch_tile = batch_tile
        tables = ([emb_age, emb_occupation, emb_area] if remove_gender
                  else [emb_gender, emb_age, emb_occupation, emb_area])
        # Constant W is packed exactly once here.
        self.packed = pack_embedding_tables(tables)

    def __call__(self, gender_idx, age_idx, occupation_idx, area_idx):
        if self.remove_gender:
            indices = [age_idx, occupation_idx, area_idx]
        else:
            indices = [gender_idx, age_idx, occupation_idx, area_idx]
        return embedding_concat_forward_packed(
            self.packed, indices, batch_tile=self.batch_tile)


def user_forward(gender_idx, age_idx, occupation_idx, area_idx,
                 emb_gender, emb_age, emb_occupation, emb_area,
                 *, remove_gender=False, batch_tile=2048):
    """One-shot functional wrapper (packs W per call; prefer UserEmbedding)."""
    mod = UserEmbedding(emb_gender, emb_age, emb_occupation, emb_area,
                        remove_gender=remove_gender, batch_tile=batch_tile)
    return mod(gender_idx, age_idx, occupation_idx, area_idx)


if __name__ == "__main__":
    # Synthetic config (MovieLens-ish but small).
    num_gender, num_age, num_occupation, num_zipcode = 2, 7, 21, 50
    embedding_dim = 32
    batch = 8

    key = jax.random.PRNGKey(0)
    k_g, k_a, k_o, k_z, k_i = jax.random.split(key, 5)

    # Deterministic parameter init (stand-in for torch.nn.Embedding weights).
    emb_gender = jax.random.normal(k_g, (num_gender, embedding_dim), jnp.float32)
    emb_age = jax.random.normal(k_a, (num_age, embedding_dim), jnp.float32)
    emb_occupation = jax.random.normal(k_o, (num_occupation, embedding_dim),
                                       jnp.float32)
    emb_area = jax.random.normal(k_z, (num_zipcode, embedding_dim), jnp.float32)

    ki1, ki2, ki3, ki4 = jax.random.split(k_i, 4)
    gender_idx = jax.random.randint(ki1, (batch,), 0, num_gender, jnp.int32)
    age_idx = jax.random.randint(ki2, (batch,), 0, num_age, jnp.int32)
    occupation_idx = jax.random.randint(ki3, (batch,), 0, num_occupation,
                                        jnp.int32)
    area_idx = jax.random.randint(ki4, (batch,), 0, num_zipcode, jnp.int32)

    # remove_gender = False (4 tables, 128-wide output).
    mod = UserEmbedding(emb_gender, emb_age, emb_occupation, emb_area,
                        remove_gender=False)
    out = jax.block_until_ready(mod(gender_idx, age_idx, occupation_idx,
                                    area_idx))
    ref = jnp.concatenate(
        [emb_gender[gender_idx], emb_age[age_idx],
         emb_occupation[occupation_idx], emb_area[area_idx]], axis=1)
    assert out.shape == (batch, 4 * embedding_dim)
    assert jnp.allclose(out, ref), "mismatch vs reference (remove_gender=False)"

    # remove_gender = True (3 tables, 96-wide output; exercises lane padding).
    mod3 = UserEmbedding(emb_gender, emb_age, emb_occupation, emb_area,
                         remove_gender=True)
    out3 = jax.block_until_ready(mod3(gender_idx, age_idx, occupation_idx,
                                      area_idx))
    ref3 = jnp.concatenate(
        [emb_age[age_idx], emb_occupation[occupation_idx],
         emb_area[area_idx]], axis=1)
    assert out3.shape == (batch, 3 * embedding_dim)
    assert jnp.allclose(out3, ref3), "mismatch vs reference (remove_gender=True)"

    print("KERNEL_OK")
</pallas_src>

<mosaic_0001>
module attributes {stable_mosaic.version = 11 : i64} {
  func.func @_gather_concat_kernel(%arg0: i32, %arg1: memref<8x4xi32, #tpu.memory_space<vmem>>, %arg2: memref<128x128xf32, #tpu.memory_space<vmem>>, %arg3: memref<8x128xf32, #tpu.memory_space<vmem>>) attributes {dimension_semantics = [#tpu.dimension_semantics<parallel>], iteration_bounds = array<i64: 1>, scalar_prefetch = 0 : i64, scratch_operands = 0 : i64, tpu.core_type = #tpu.core_type<tc>, window_params = [{transform_indices = @transform_0, window_bounds = array<i64: 8, 4>}, {pipeline_mode = #tpu.pipeline_mode<synchronous>, transform_indices = @transform_1, window_bounds = array<i64: 128, 128>}, {transform_indices = @transform_2, window_bounds = array<i64: 8, 128>}]} {
    %0 = tpu.iota {dimensions = array<i32: 1>} : vector<8x128xi32>
    %c0 = arith.constant 0 : index
    %c0_0 = arith.constant 0 : index
    %1 = vector.load %arg1[%c0, %c0_0] : memref<8x4xi32, #tpu.memory_space<vmem>>, vector<8x1xi32>
    %2 = vector.broadcast %1 : vector<8x1xi32> to vector<8x128xi32>
    %3 = arith.cmpi eq, %0, %2 : vector<8x128xi32>
    %c0_1 = arith.constant 0 : index
    %c1 = arith.constant 1 : index
    %4 = vector.load %arg1[%c0_1, %c1] : memref<8x4xi32, #tpu.memory_space<vmem>>, vector<8x1xi32>
    %5 = vector.broadcast %4 : vector<8x1xi32> to vector<8x128xi32>
    %6 = arith.cmpi eq, %0, %5 : vector<8x128xi32>
    %7 = arith.ori %3, %6 : vector<8x128xi1>
    %c0_2 = arith.constant 0 : index
    %c2 = arith.constant 2 : index
    %8 = vector.load %arg1[%c0_2, %c2] : memref<8x4xi32, #tpu.memory_space<vmem>>, vector<8x1xi32>
    %9 = vector.broadcast %8 : vector<8x1xi32> to vector<8x128xi32>
    %10 = arith.cmpi eq, %0, %9 : vector<8x128xi32>
    %11 = arith.ori %7, %10 : vector<8x128xi1>
    %c0_3 = arith.constant 0 : index
    %c3 = arith.constant 3 : index
    %12 = vector.load %arg1[%c0_3, %c3] : memref<8x4xi32, #tpu.memory_space<vmem>>, vector<8x1xi32>
    %13 = vector.broadcast %12 : vector<8x1xi32> to vector<8x128xi32>
    %14 = arith.cmpi eq, %0, %13 : vector<8x128xi32>
    %15 = arith.ori %11, %14 : vector<8x128xi1>
    %16 = arith.extui %15 : vector<8x128xi1> to vector<8x128xi32>
    %17 = arith.sitofp %16 : vector<8x128xi32> to vector<8x128xf32>
    %c0_4 = arith.constant 0 : index
    %c0_5 = arith.constant 0 : index
    %18 = vector.load %arg2[%c0_4, %c0_5] : memref<128x128xf32, #tpu.memory_space<vmem>>, vector<128x128xf32>
    %cst = arith.constant dense<0.000000e+00> : vector<8x128xf32>
    %19 = tpu.matmul %17, %18, %cst {dimension_numbers = #tpu.dot_dimension_numbers<[1], [0], [0], [1], [0, 0, 1, 1], [], []>, precision = #tpu.contract_precision<fp32>} : vector<8x128xf32>, vector<128x128xf32>, vector<8x128xf32> -> vector<8x128xf32>
    %c0_6 = arith.constant 0 : index
    %c0_7 = arith.constant 0 : index
    %20 = vector.load %arg3[%c0_6, %c0_7] : memref<8x128xf32, #tpu.memory_space<vmem>>, vector<8x128xf32>
    tpu.vector_store %arg3[%c0_6, %c0_7], %19 {strides = array<i32>} : memref<8x128xf32, #tpu.memory_space<vmem>>, vector<8x128xf32>,
    return
  }
  func.func @transform_0(%arg0: i32) -> (i32, i32) {
    %c0_i32 = arith.constant 0 : i32
    %c0_i32_0 = arith.constant 0 : i32
    return %arg0, %c0_i32 : i32, i32
  }
  func.func @transform_1(%arg0: i32) -> (i32, i32) {
    %c0_i32 = arith.constant 0 : i32
    %c0_i32_0 = arith.constant 0 : i32
    %c0_i32_1 = arith.constant 0 : i32
    return %c0_i32, %c0_i32_0 : i32, i32
  }
  func.func @transform_2(%arg0: i32) -> (i32, i32) {
    %c0_i32 = arith.constant 0 : i32
    %c0_i32_0 = arith.constant 0 : i32
    return %arg0, %c0_i32 : i32, i32
  }
}

</mosaic_0001>

<llo_original>
// kernel: tpu_custom_call.1
$region0: #{tpu_custom_call.1}
  #allocation0 [shape = 'u32[]', space=smem, size = 0x4, offset = 0x4, fixed_abs, tag = 'smem constant byte address 0x4 - core index']
  #allocation1 [shape = 'u32[144,128]{1,0:T(1,128)}', space=vmem, size = 0x12000, scoped, tag = 'internal scratch']
  %s0 = inlined_call_operand.vmem [shape: s32[8,4], index: 0, kind: input, shape index: {}]
  %s1 = inlined_call_operand.hbm [shape: f32[128,128], index: 1, kind: input, shape index: {}]
  %s2 = inlined_call_operand.hbm [shape: f32[8,128], index: 2, kind: output, shape index: {}]
  %s3 = sld [smem:[#allocation0]]
  $region22: #{tpu_custom_call.1} parent=0
    _
  %s5 = ssub.s32 1, %s3
  %s6 = scalar_select 0, %s5, %s3
  $region1: #{tpu_custom_call.1} parent=0
    #allocation2 [shape = 'u8[65536]{0}', space=vmem, size = 0x10000, scoped, tag = 'input window, operand 1, single buffered']
    #allocation3 [shape = 's32[1]{0}', space=sflag, size = 0x4, scoped, tag = 'scoped memory for tpu_custom_call.1']
    #allocation4 [shape = 's32[1]{0}', space=sflag, size = 0x4, scoped, tag = 'scoped memory for tpu_custom_call.1']
    #allocation5 [shape = 'u8[4096]{0}', space=vmem, size = 0x1000, scoped, tag = 'output window, operand 0, single buffered']
    %7 = vsyncpa [#allocation3], 0
    %8 = vsyncpa [#allocation4], 0
    // Predicated region
    $region2: #{tpu_custom_call.1} parent=1 // pred_check
      _
    $region3: #{tpu_custom_call.1} parent=1 // pred_check_branch
      %10 = sbr.rel (0) target = $region5
    $region4: #{tpu_custom_call.1} parent=1 // pred_region
      _
    $region5: #{tpu_custom_call.1} parent=1 // pred_fallthru
      _
    // Predicated region
    $region6: #{tpu_custom_call.1} parent=1 // pred_check
      _
    $region7: #{tpu_custom_call.1} parent=1 // pred_check_branch
      %12 = sbr.rel (0) target = $region9
    $region8: #{tpu_custom_call.1} parent=1 // pred_region
      %s14 = ssub.s32 2048, 2048
      %15 = vsyncadd [#allocation3], %s14
      %s16 = sshll.u32 [#allocation2], 4
      %s17 = int_to_ptr.vmem [resolvable:$true] %s16
      %22 = dma.hbm_to_vmem [thread:$0]  %s1, 2048, %s17, [#allocation3], 128, 128, 8
    $region9: #{tpu_custom_call.1} parent=1 // pred_fallthru
      _
    // Predicated region
    $region10: #{tpu_custom_call.1} parent=1 // pred_check
      _
    $region11: #{tpu_custom_call.1} parent=1 // pred_check_branch
      %24 = sbr.rel (0) target = $region13
    $region12: #{tpu_custom_call.1} parent=1 // pred_region
      %25 = dma.done [#allocation3], 2048
    $region13: #{tpu_custom_call.1} parent=1 // pred_fallthru
      _
    %v26 = vlaneseq
    %v27 = vand.u32 %v26, 127
    %v28 = vld [vmem:[%s0] sm:$0xff]
    %29 = vset.pattern.permute.xlu0 0
    %30 = vperm.xlu0 %29, %v28
    %v31 = vpop.permute.xlu0 %30
    %vm32 = vcmp.eq.s32.totalorder %v27, %v31
    %33 = vset.pattern.permute.xlu0 1
    %34 = vperm.xlu0 %33, %v28
    %v35 = vpop.permute.xlu0 %34
    %vm36 = vcmp.eq.s32.totalorder %v27, %v35
    %vm37 = vmor %vm32, %vm36
    %38 = vset.pattern.permute.xlu0 2
    %39 = vperm.xlu0 %38, %v28
    %v40 = vpop.permute.xlu0 %39
    %vm41 = vcmp.eq.s32.totalorder %v27, %v40
    %vm42 = vmor %vm37, %vm41
    %43 = vset.pattern.permute.xlu0 3
    %44 = vperm.xlu0 %43, %v28
    %v45 = vpop.permute.xlu0 %44
    %vm46 = vcmp.eq.s32.totalorder %v27, %v45
    %vm47 = vmor %vm42, %vm46
    %v48 = vsel %vm47, 1, 0
    %v49 = vcvt.s32.f32 %v48
    %v50 = vld [vmem:[#allocation2] sm:$0xff]
    %v51 = vld [vmem:[#allocation2 + $0x8] sm:$0xff]
    %v52 = vld [vmem:[#allocation2 + $0x10] sm:$0xff]
    %v53 = vld [vmem:[#allocation2 + $0x18] sm:$0xff]
    %v54 = vld [vmem:[#allocation2 + $0x20] sm:$0xff]
    %v55 = vld [vmem:[#allocation2 + $0x28] sm:$0xff]
    %v56 = vld [vmem:[#allocation2 + $0x30] sm:$0xff]
    %v57 = vld [vmem:[#allocation2 + $0x38] sm:$0xff]
    %v58 = vld [vmem:[#allocation2 + $0x40] sm:$0xff]
    %v59 = vld [vmem:[#allocation2 + $0x48] sm:$0xff]
    %v60 = vld [vmem:[#allocation2 + $0x50] sm:$0xff]
    %v61 = vld [vmem:[#allocation2 + $0x58] sm:$0xff]
    %v62 = vld [vmem:[#allocation2 + $0x60] sm:$0xff]
    %v63 = vld [vmem:[#allocation2 + $0x68] sm:$0xff]
    %v64 = vld [vmem:[#allocation2 + $0x70] sm:$0xff]
    %v65 = vld [vmem:[#allocation2 + $0x78] sm:$0xff]
    %66 = vmatprep.subr.mxu0 0.0
    %v67 = vand.u32 %v65, 4294901760
    %68 = vmatpush1.msra.mxu0 %v67
    %69 = vmatprep.subr.mxu0 0.0
    %v70 = vand.u32 %v64, 4294901760
    %71 = vmatpush1.msra.mxu0 %v70
    %72 = vmatprep.subr.mxu0 0.0
    %v73 = vand.u32 %v63, 4294901760
    %74 = vmatpush1.msra.mxu0 %v73
    %75 = vmatprep.subr.mxu0 0.0
    %v76 = vand.u32 %v62, 4294901760
    %77 = vmatpush1.msra.mxu0 %v76
    %78 = vmatprep.subr.mxu0 0.0
    %v79 = vand.u32 %v61, 4294901760
    %80 = vmatpush1.msra.mxu0 %v79
    %81 = vmatprep.subr.mxu0 0.0
    %v82 = vand.u32 %v60, 4294901760
    %83 = vmatpush1.msra.mxu0 %v82
    %84 = vmatprep.subr.mxu0 0.0
    %v85 = vand.u32 %v59, 4294901760
    %86 = vmatpush1.msra.mxu0 %v85
    %87 = vmatprep.subr.mxu0 0.0
    %v88 = vand.u32 %v58, 4294901760
    %89 = vmatpush1.msra.mxu0 %v88
    %90 = vmatprep.subr.mxu0 0.0
    %v91 = vand.u32 %v57, 4294901760
    %92 = vmatpush1.msra.mxu0 %v91
    %93 = vmatprep.subr.mxu0 0.0
    %v94 = vand.u32 %v56, 4294901760
    %95 = vmatpush1.msra.mxu0 %v94
    %96 = vmatprep.subr.mxu0 0.0
    %v97 = vand.u32 %v55, 4294901760
    %98 = vmatpush1.msra.mxu0 %v97
    %99 = vmatprep.subr.mxu0 0.0
    %v100 = vand.u32 %v54, 4294901760
    %101 = vmatpush1.msra.mxu0 %v100
    %102 = vmatprep.subr.mxu0 0.0
    %v103 = vand.u32 %v53, 4294901760
    %104 = vmatpush1.msra.mxu0 %v103
    %105 = vmatprep.subr.mxu0 0.0
    %v106 = vand.u32 %v52, 4294901760
    %107 = vmatpush1.msra.mxu0 %v106
    %108 = vmatprep.subr.mxu0 0.0
    %v109 = vand.u32 %v51, 4294901760
    %110 = vmatpush1.msra.mxu0 %v109
    %111 = vmatprep.subr.mxu0 0.0
    %v112 = vand.u32 %v50, 4294901760
    %113 = vmatpush1.msra.mxu0 %v112
    %114 = vmatprep.subr.mxu0 0.0
    %115 = vmatpush2.msra.mxu0 0.0
    %116 = vmatprep.subr.mxu0 0.0
    %117 = vmatpush2.msra.mxu0 0.0
    %118 = vmatprep.subr.mxu0 0.0
    %119 = vmatpush2.msra.mxu0 0.0
    %120 = vmatprep.subr.mxu0 0.0
    %121 = vmatpush2.msra.mxu0 0.0
    %122 = vmatprep.subr.mxu0 0.0
    %123 = vmatpush2.msra.mxu0 0.0
    %124 = vmatprep.subr.mxu0 0.0
    %125 = vmatpush2.msra.mxu0 0.0
    %126 = vmatprep.subr.mxu0 0.0
    %127 = vmatpush2.msra.mxu0 0.0
    %128 = vmatprep.subr.mxu0 0.0
    %129 = vmatpush2.msra.mxu0 0.0
    %130 = vmatprep.subr.mxu0 0.0
    %131 = vmatpush2.msra.mxu0 0.0
    %132 = vmatprep.subr.mxu0 0.0
    %133 = vmatpush2.msra.mxu0 0.0
    %134 = vmatprep.subr.mxu0 0.0
    %135 = vmatpush2.msra.mxu0 0.0
    %136 = vmatprep.subr.mxu0 0.0
    %137 = vmatpush2.msra.mxu0 0.0
    %138 = vmatprep.subr.mxu0 0.0
    %139 = vmatpush2.msra.mxu0 0.0
    %140 = vmatprep.subr.mxu0 0.0
    %141 = vmatpush2.msra.mxu0 0.0
    %142 = vmatprep.subr.mxu0 0.0
    %143 = vmatpush2.msra.mxu0 0.0
    %144 = vmatprep.subr.mxu0 0.0
    %145 = vmatpush2.msra.mxu0 0.0
    %146 = vmatprep.mubr.f32.mxu0 0.0
    %v147 = vand.u32 %v49, 4294901760
    %v148 = vsub.f32 %v49, %v147
    %v149 = vand.u32 %v148, 4294901760
    %v150 = vsub.f32 %v148, %v149
    %v151 = vand.u32 %v150, 4294901760
    %152 = vmatmul.mubr.f32.gmra.mxu0 %v151
    %v153 = vpop.f32.mrf.mxu0
    %v154 = vadd.f32 0.0, %v153
    %v155 = vpop.f32.mrf.mxu0
    %156 = vdwg.mxu0
    %157 = vmatprep.subr.mxu0 0.0
    %v158 = vand.u32 %v65, 4294901760
    %v159 = vsub.f32 %v65, %v158
    %v160 = vand.u32 %v159, 4294901760
    %v161 = vsub.f32 %v159, %v160
    %v162 = vand.u32 %v161, 4294901760
    %163 = vmatpush1.msra.mxu0 %v162
    %164 = vmatprep.subr.mxu0 0.0
    %v165 = vand.u32 %v64, 4294901760
    %v166 = vsub.f32 %v64, %v165
    %v167 = vand.u32 %v166, 4294901760
    %v168 = vsub.f32 %v166, %v167
    %v169 = vand.u32 %v168, 4294901760
    %170 = vmatpush1.msra.mxu0 %v169
    %171 = vmatprep.subr.mxu0 0.0
    %v172 = vand.u32 %v63, 4294901760
    %v173 = vsub.f32 %v63, %v172
    %v174 = vand.u32 %v173, 4294901760
    %v175 = vsub.f32 %v173, %v174
    %v176 = vand.u32 %v175, 4294901760
    %177 = vmatpush1.msra.mxu0 %v176
    %178 = vmatprep.subr.mxu0 0.0
    %v179 = vand.u32 %v62, 4294901760
    %v180 = vsub.f32 %v62, %v179
    %v181 = vand.u32 %v180, 4294901760
    %v182 = vsub.f32 %v180, %v181
    %v183 = vand.u32 %v182, 4294901760
    %184 = vmatpush1.msra.mxu0 %v183
    %185 = vmatprep.subr.mxu0 0.0
    %v186 = vand.u32 %v61, 4294901760
    %v187 = vsub.f32 %v61, %v186
    %v188 = vand.u32 %v187, 4294901760
    %v189 = vsub.f32 %v187, %v188
    %v190 = vand.u32 %v189, 4294901760
    %191 = vmatpush1.msra.mxu0 %v190
    %192 = vmatprep.subr.mxu0 0.0
    %v193 = vand.u32 %v60, 4294901760
    %v194 = vsub.f32 %v60, %v193
    %v195 = vand.u32 %v194, 4294901760
    %v196 = vsub.f32 %v194, %v195
    %v197 = vand.u32 %v196, 4294901760
    %198 = vmatpush1.msra.mxu0 %v197
    %199 = vmatprep.subr.mxu0 0.0
    %v200 = vand.u32 %v59, 4294901760
    %v201 = vsub.f32 %v59, %v200
    %v202 = vand.u32 %v201, 4294901760
    %v203 = vsub.f32 %v201, %v202
    %v204 = vand.u32 %v203, 4294901760
    %205 = vmatpush1.msra.mxu0 %v204
    %206 = vmatprep.subr.mxu0 0.0
    %v207 = vand.u32 %v58, 4294901760
    %v208 = vsub.f32 %v58, %v207
    %v209 = vand.u32 %v208, 4294901760
    %v210 = vsub.f32 %v208, %v209
    %v211 = vand.u32 %v210, 4294901760
    %212 = vmatpush1.msra.mxu0 %v211
    %213 = vmatprep.subr.mxu0 0.0
    %v214 = vand.u32 %v57, 4294901760
    %v215 = vsub.f32 %v57, %v214
    %v216 = vand.u32 %v215, 4294901760
    %v217 = vsub.f32 %v215, %v216
    %v218 = vand.u32 %v217, 4294901760
    %219 = vmatpush1.msra.mxu0 %v218
    %220 = vmatprep.subr.mxu0 0.0
    %v221 = vand.u32 %v56, 4294901760
    %v222 = vsub.f32 %v56, %v221
    %v223 = vand.u32 %v222, 4294901760
    %v224 = vsub.f32 %v222, %v223
    %v225 = vand.u32 %v224, 4294901760
    %226 = vmatpush1.msra.mxu0 %v225
    %227 = vmatprep.subr.mxu0 0.0
    %v228 = vand.u32 %v55, 4294901760
    %v229 = vsub.f32 %v55, %v228
    %v230 = vand.u32 %v229, 4294901760
    %v231 = vsub.f32 %v229, %v230
    %v232 = vand.u32 %v231, 4294901760
    %233 = vmatpush1.msra.mxu0 %v232
    %234 = vmatprep.subr.mxu0 0.0
    %v235 = vand.u32 %v54, 4294901760
    %v236 = vsub.f32 %v54, %v235
    %v237 = vand.u32 %v236, 4294901760
    %v238 = vsub.f32 %v236, %v237
    %v239 = vand.u32 %v238, 4294901760
    %240 = vmatpush1.msra.mxu0 %v239
    %241 = vmatprep.subr.mxu0 0.0
    %v242 = vand.u32 %v53, 4294901760
    %v243 = vsub.f32 %v53, %v242
    %v244 = vand.u32 %v243, 4294901760
    %v245 = vsub.f32 %v243, %v244
    %v246 = vand.u32 %v245, 4294901760
    %247 = vmatpush1.msra.mxu0 %v246
    %248 = vmatprep.subr.mxu0 0.0
    %v249 = vand.u32 %v52, 4294901760
    %v250 = vsub.f32 %v52, %v249
    %v251 = vand.u32 %v250, 4294901760
    %v252 = vsub.f32 %v250, %v251
    %v253 = vand.u32 %v252, 4294901760
    %254 = vmatpush1.msra.mxu0 %v253
    %255 = vmatprep.subr.mxu0 0.0
    %v256 = vand.u32 %v51, 4294901760
    %v257 = vsub.f32 %v51, %v256
    %v258 = vand.u32 %v257, 4294901760
    %v259 = vsub.f32 %v257, %v258
    %v260 = vand.u32 %v259, 4294901760
    %261 = vmatpush1.msra.mxu0 %v260
    %262 = vmatprep.subr.mxu0 0.0
    %v263 = vand.u32 %v50, 4294901760
    %v264 = vsub.f32 %v50, %v263
    %v265 = vand.u32 %v264, 4294901760
    %v266 = vsub.f32 %v264, %v265
    %v267 = vand.u32 %v266, 4294901760
    %268 = vmatpush1.msra.mxu0 %v267
    %269 = vmatprep.subr.mxu0 0.0
    %270 = vmatpush2.msra.mxu0 0.0
    %271 = vmatprep.subr.mxu0 0.0
    %272 = vmatpush2.msra.mxu0 0.0
    %273 = vmatprep.subr.mxu0 0.0
    %274 = vmatpush2.msra.mxu0 0.0
    %275 = vmatprep.subr.mxu0 0.0
    %276 = vmatpush2.msra.mxu0 0.0
    %277 = vmatprep.subr.mxu0 0.0
    %278 = vmatpush2.msra.mxu0 0.0
    %279 = vmatprep.subr.mxu0 0.0
    %280 = vmatpush2.msra.mxu0 0.0
    %281 = vmatprep.subr.mxu0 0.0
    %282 = vmatpush2.msra.mxu0 0.0
    %283 = vmatprep.subr.mxu0 0.0
    %284 = vmatpush2.msra.mxu0 0.0
    %285 = vmatprep.subr.mxu0 0.0
    %286 = vmatpush2.msra.mxu0 0.0
    %287 = vmatprep.subr.mxu0 0.0
    %288 = vmatpush2.msra.mxu0 0.0
    %289 = vmatprep.subr.mxu0 0.0
    %290 = vmatpush2.msra.mxu0 0.0
    %291 = vmatprep.subr.mxu0 0.0
    %292 = vmatpush2.msra.mxu0 0.0
    %293 = vmatprep.subr.mxu0 0.0
    %294 = vmatpush2.msra.mxu0 0.0
    %295 = vmatprep.subr.mxu0 0.0
    %296 = vmatpush2.msra.mxu0 0.0
    %297 = vmatprep.subr.mxu0 0.0
    %298 = vmatpush2.msra.mxu0 0.0
    %299 = vmatprep.subr.mxu0 0.0
    %300 = vmatpush2.msra.mxu0 0.0
    %301 = vmatprep.mubr.f32.mxu0 0.0
    %v302 = vand.u32 %v49, 4294901760
    %303 = vmatmul.mubr.f32.gmra.mxu0 %v302
    %v304 = vpop.f32.mrf.mxu0
    %v305 = vadd.f32 %v154, %v304
    %v306 = vpop.f32.mrf.mxu0
    %307 = vdwg.mxu0
    %308 = vmatprep.subr.mxu0 0.0
    %v309 = vand.u32 %v65, 4294901760
    %v310 = vsub.f32 %v65, %v309
    %311 = vmatpush1.msra.mxu0 %v310
    %312 = vmatprep.subr.mxu0 0.0
    %v313 = vand.u32 %v64, 4294901760
    %v314 = vsub.f32 %v64, %v313
    %315 = vmatpush1.msra.mxu0 %v314
    %316 = vmatprep.subr.mxu0 0.0
    %v317 = vand.u32 %v63, 4294901760
    %v318 = vsub.f32 %v63, %v317
    %319 = vmatpush1.msra.mxu0 %v318
    %320 = vmatprep.subr.mxu0 0.0
    %v321 = vand.u32 %v62, 4294901760
    %v322 = vsub.f32 %v62, %v321
    %323 = vmatpush1.msra.mxu0 %v322
    %324 = vmatprep.subr.mxu0 0.0
    %v325 = vand.u32 %v61, 4294901760
    %v326 = vsub.f32 %v61, %v325
    %327 = vmatpush1.msra.mxu0 %v326
    %328 = vmatprep.subr.mxu0 0.0
    %v329 = vand.u32 %v60, 4294901760
    %v330 = vsub.f32 %v60, %v329
    %331 = vmatpush1.msra.mxu0 %v330
    %332 = vmatprep.subr.mxu0 0.0
    %v333 = vand.u32 %v59, 4294901760
    %v334 = vsub.f32 %v59, %v333
    %335 = vmatpush1.msra.mxu0 %v334
    %336 = vmatprep.subr.mxu0 0.0
    %v337 = vand.u32 %v58, 4294901760
    %v338 = vsub.f32 %v58, %v337
    %339 = vmatpush1.msra.mxu0 %v338
    %340 = vmatprep.subr.mxu0 0.0
    %v341 = vand.u32 %v57, 4294901760
    %v342 = vsub.f32 %v57, %v341
    %343 = vmatpush1.msra.mxu0 %v342
    %344 = vmatprep.subr.mxu0 0.0
    %v345 = vand.u32 %v56, 4294901760
    %v346 = vsub.f32 %v56, %v345
    %347 = vmatpush1.msra.mxu0 %v346
    %348 = vmatprep.subr.mxu0 0.0
    %v349 = vand.u32 %v55, 4294901760
    %v350 = vsub.f32 %v55, %v349
    %351 = vmatpush1.msra.mxu0 %v350
    %352 = vmatprep.subr.mxu0 0.0
    %v353 = vand.u32 %v54, 4294901760
    %v354 = vsub.f32 %v54, %v353
    %355 = vmatpush1.msra.mxu0 %v354
    %356 = vmatprep.subr.mxu0 0.0
    %v357 = vand.u32 %v53, 4294901760
    %v358 = vsub.f32 %v53, %v357
    %359 = vmatpush1.msra.mxu0 %v358
    %360 = vmatprep.subr.mxu0 0.0
    %v361 = vand.u32 %v52, 4294901760
    %v362 = vsub.f32 %v52, %v361
    %363 = vmatpush1.msra.mxu0 %v362
    %364 = vmatprep.subr.mxu0 0.0
    %v365 = vand.u32 %v51, 4294901760
    %v366 = vsub.f32 %v51, %v365
    %367 = vmatpush1.msra.mxu0 %v366
    %368 = vmatprep.subr.mxu0 0.0
    %v369 = vand.u32 %v50, 4294901760
    %v370 = vsub.f32 %v50, %v369
    %371 = vmatpush1.msra.mxu0 %v370
    %372 = vmatprep.subr.mxu0 0.0
    %373 = vmatpush2.msra.mxu0 0.0
    %374 = vmatprep.subr.mxu0 0.0
    %375 = vmatpush2.msra.mxu0 0.0
    %376 = vmatprep.subr.mxu0 0.0
    %377 = vmatpush2.msra.mxu0 0.0
    %378 = vmatprep.subr.mxu0 0.0
    %379 = vmatpush2.msra.mxu0 0.0
    %380 = vmatprep.subr.mxu0 0.0
    %381 = vmatpush2.msra.mxu0 0.0
    %382 = vmatprep.subr.mxu0 0.0
    %383 = vmatpush2.msra.mxu0 0.0
    %384 = vmatprep.subr.mxu0 0.0
    %385 = vmatpush2.msra.mxu0 0.0
    %386 = vmatprep.subr.mxu0 0.0
    %387 = vmatpush2.msra.mxu0 0.0
    %388 = vmatprep.subr.mxu0 0.0
    %389 = vmatpush2.msra.mxu0 0.0
    %390 = vmatprep.subr.mxu0 0.0
    %391 = vmatpush2.msra.mxu0 0.0
    %392 = vmatprep.subr.mxu0 0.0
    %393 = vmatpush2.msra.mxu0 0.0
    %394 = vmatprep.subr.mxu0 0.0
    %395 = vmatpush2.msra.mxu0 0.0
    %396 = vmatprep.subr.mxu0 0.0
    %397 = vmatpush2.msra.mxu0 0.0
    %398 = vmatprep.subr.mxu0 0.0
    %399 = vmatpush2.msra.mxu0 0.0
    %400 = vmatprep.subr.mxu0 0.0
    %401 = vmatpush2.msra.mxu0 0.0
    %402 = vmatprep.subr.mxu0 0.0
    %403 = vmatpush2.msra.mxu0 0.0
    %404 = vmatprep.mubr.f32.mxu0 0.0
    %v405 = vand.u32 %v49, 4294901760
    %v406 = vsub.f32 %v49, %v405
    %407 = vmatmul.mubr.f32.gmra.mxu0 %v406
    %v408 = vpop.f32.mrf.mxu0
    %v409 = vadd.f32 %v305, %v408
    %v410 = vpop.f32.mrf.mxu0
    %411 = vdwg.mxu0
    %412 = vmatprep.subr.mxu0 0.0
    %v413 = vand.u32 %v65, 4294901760
    %414 = vmatpush1.msra.mxu0 %v413
    %415 = vmatprep.subr.mxu0 0.0
    %v416 = vand.u32 %v64, 4294901760
    %417 = vmatpush1.msra.mxu0 %v416
    %418 = vmatprep.subr.mxu0 0.0
    %v419 = vand.u32 %v63, 4294901760
    %420 = vmatpush1.msra.mxu0 %v419
    %421 = vmatprep.subr.mxu0 0.0
    %v422 = vand.u32 %v62, 4294901760
    %423 = vmatpush1.msra.mxu0 %v422
    %424 = vmatprep.subr.mxu0 0.0
    %v425 = vand.u32 %v61, 4294901760
    %426 = vmatpush1.msra.mxu0 %v425
    %427 = vmatprep.subr.mxu0 0.0
    %v428 = vand.u32 %v60, 4294901760
    %429 = vmatpush1.msra.mxu0 %v428
    %430 = vmatprep.subr.mxu0 0.0
    %v431 = vand.u32 %v59, 4294901760
    %432 = vmatpush1.msra.mxu0 %v431
    %433 = vmatprep.subr.mxu0 0.0
    %v434 = vand.u32 %v58, 4294901760
    %435 = vmatpush1.msra.mxu0 %v434
    %436 = vmatprep.subr.mxu0 0.0
    %v437 = vand.u32 %v57, 4294901760
    %438 = vmatpush1.msra.mxu0 %v437
    %439 = vmatprep.subr.mxu0 0.0
    %v440 = vand.u32 %v56, 4294901760
    %441 = vmatpush1.msra.mxu0 %v440
    %442 = vmatprep.subr.mxu0 0.0
    %v443 = vand.u32 %v55, 4294901760
    %444 = vmatpush1.msra.mxu0 %v443
    %445 = vmatprep.subr.mxu0 0.0
    %v446 = vand.u32 %v54, 4294901760
    %447 = vmatpush1.msra.mxu0 %v446
    %448 = vmatprep.subr.mxu0 0.0
    %v449 = vand.u32 %v53, 4294901760
    %450 = vmatpush1.msra.mxu0 %v449
    %451 = vmatprep.subr.mxu0 0.0
    %v452 = vand.u32 %v52, 4294901760
    %453 = vmatpush1.msra.mxu0 %v452
    %454 = vmatprep.subr.mxu0 0.0
    %v455 = vand.u32 %v51, 4294901760
    %456 = vmatpush1.msra.mxu0 %v455
    %457 = vmatprep.subr.mxu0 0.0
    %v458 = vand.u32 %v50, 4294901760
    %459 = vmatpush1.msra.mxu0 %v458
    %460 = vmatprep.subr.mxu0 0.0
    %461 = vmatpush2.msra.mxu0 0.0
    %462 = vmatprep.subr.mxu0 0.0
    %463 = vmatpush2.msra.mxu0 0.0
    %464 = vmatprep.subr.mxu0 0.0
    %465 = vmatpush2.msra.mxu0 0.0
    %466 = vmatprep.subr.mxu0 0.0
    %467 = vmatpush2.msra.mxu0 0.0
    %468 = vmatprep.subr.mxu0 0.0
    %469 = vmatpush2.msra.mxu0 0.0
    %470 = vmatprep.subr.mxu0 0.0
    %471 = vmatpush2.msra.mxu0 0.0
    %472 = vmatprep.subr.mxu0 0.0
    %473 = vmatpush2.msra.mxu0 0.0
    %474 = vmatprep.subr.mxu0 0.0
    %475 = vmatpush2.msra.mxu0 0.0
    %476 = vmatprep.subr.mxu0 0.0
    %477 = vmatpush2.msra.mxu0 0.0
    %478 = vmatprep.subr.mxu0 0.0
    %479 = vmatpush2.msra.mxu0 0.0
    %480 = vmatprep.subr.mxu0 0.0
    %481 = vmatpush2.msra.mxu0 0.0
    %482 = vmatprep.subr.mxu0 0.0
    %483 = vmatpush2.msra.mxu0 0.0
    %484 = vmatprep.subr.mxu0 0.0
    %485 = vmatpush2.msra.mxu0 0.0
    %486 = vmatprep.subr.mxu0 0.0
    %487 = vmatpush2.msra.mxu0 0.0
    %488 = vmatprep.subr.mxu0 0.0
    %489 = vmatpush2.msra.mxu0 0.0
    %490 = vmatprep.subr.mxu0 0.0
    %491 = vmatpush2.msra.mxu0 0.0
    %492 = vmatprep.mubr.f32.mxu0 0.0
    %v493 = vand.u32 %v49, 4294901760
    %v494 = vsub.f32 %v49, %v493
    %v495 = vand.u32 %v494, 4294901760
    %496 = vmatmul.mubr.f32.gmra.mxu0 %v495
    %v497 = vpop.f32.mrf.mxu0
    %v498 = vadd.f32 %v409, %v497
    %v499 = vpop.f32.mrf.mxu0
    %500 = vdwg.mxu0
    %501 = vmatprep.subr.mxu0 0.0
    %v502 = vand.u32 %v65, 4294901760
    %v503 = vsub.f32 %v65, %v502
    %v504 = vand.u32 %v503, 4294901760
    %505 = vmatpush1.msra.mxu0 %v504
    %506 = vmatprep.subr.mxu0 0.0
    %v507 = vand.u32 %v64, 4294901760
    %v508 = vsub.f32 %v64, %v507
    %v509 = vand.u32 %v508, 4294901760
    %510 = vmatpush1.msra.mxu0 %v509
    %511 = vmatprep.subr.mxu0 0.0
    %v512 = vand.u32 %v63, 4294901760
    %v513 = vsub.f32 %v63, %v512
    %v514 = vand.u32 %v513, 4294901760
    %515 = vmatpush1.msra.mxu0 %v514
    %516 = vmatprep.subr.mxu0 0.0
    %v517 = vand.u32 %v62, 4294901760
    %v518 = vsub.f32 %v62, %v517
    %v519 = vand.u32 %v518, 4294901760
    %520 = vmatpush1.msra.mxu0 %v519
    %521 = vmatprep.subr.mxu0 0.0
    %v522 = vand.u32 %v61, 4294901760
    %v523 = vsub.f32 %v61, %v522
    %v524 = vand.u32 %v523, 4294901760
    %525 = vmatpush1.msra.mxu0 %v524
    %526 = vmatprep.subr.mxu0 0.0
    %v527 = vand.u32 %v60, 4294901760
    %v528 = vsub.f32 %v60, %v527
    %v529 = vand.u32 %v528, 4294901760
    %530 = vmatpush1.msra.mxu0 %v529
    %531 = vmatprep.subr.mxu0 0.0
    %v532 = vand.u32 %v59, 4294901760
    %v533 = vsub.f32 %v59, %v532
    %v534 = vand.u32 %v533, 4294901760
    %535 = vmatpush1.msra.mxu0 %v534
    %536 = vmatprep.subr.mxu0 0.0
    %v537 = vand.u32 %v58, 4294901760
    %v538 = vsub.f32 %v58, %v537
    %v539 = vand.u32 %v538, 4294901760
    %540 = vmatpush1.msra.mxu0 %v539
    %541 = vmatprep.subr.mxu0 0.0
    %v542 = vand.u32 %v57, 4294901760
    %v543 = vsub.f32 %v57, %v542
    %v544 = vand.u32 %v543, 4294901760
    %545 = vmatpush1.msra.mxu0 %v544
    %546 = vmatprep.subr.mxu0 0.0
    %v547 = vand.u32 %v56, 4294901760
    %v548 = vsub.f32 %v56, %v547
    %v549 = vand.u32 %v548, 4294901760
    %550 = vmatpush1.msra.mxu0 %v549
    %551 = vmatprep.subr.mxu0 0.0
    %v552 = vand.u32 %v55, 4294901760
    %v553 = vsub.f32 %v55, %v552
    %v554 = vand.u32 %v553, 4294901760
    %555 = vmatpush1.msra.mxu0 %v554
    %556 = vmatprep.subr.mxu0 0.0
    %v557 = vand.u32 %v54, 4294901760
    %v558 = vsub.f32 %v54, %v557
    %v559 = vand.u32 %v558, 4294901760
    %560 = vmatpush1.msra.mxu0 %v559
    %561 = vmatprep.subr.mxu0 0.0
    %v562 = vand.u32 %v53, 4294901760
    %v563 = vsub.f32 %v53, %v562
    %v564 = vand.u32 %v563, 4294901760
    %565 = vmatpush1.msra.mxu0 %v564
    %566 = vmatprep.subr.mxu0 0.0
    %v567 = vand.u32 %v52, 4294901760
    %v568 = vsub.f32 %v52, %v567
    %v569 = vand.u32 %v568, 4294901760
    %570 = vmatpush1.msra.mxu0 %v569
    %571 = vmatprep.subr.mxu0 0.0
    %v572 = vand.u32 %v51, 4294901760
    %v573 = vsub.f32 %v51, %v572
    %v574 = vand.u32 %v573, 4294901760
    %575 = vmatpush1.msra.mxu0 %v574
    %576 = vmatprep.subr.mxu0 0.0
    %v577 = vand.u32 %v50, 4294901760
    %v578 = vsub.f32 %v50, %v577
    %v579 = vand.u32 %v578, 4294901760
    %580 = vmatpush1.msra.mxu0 %v579
    %581 = vmatprep.subr.mxu0 0.0
    %582 = vmatpush2.msra.mxu0 0.0
    %583 = vmatprep.subr.mxu0 0.0
    %584 = vmatpush2.msra.mxu0 0.0
    %585 = vmatprep.subr.mxu0 0.0
    %586 = vmatpush2.msra.mxu0 0.0
    %587 = vmatprep.subr.mxu0 0.0
    %588 = vmatpush2.msra.mxu0 0.0
    %589 = vmatprep.subr.mxu0 0.0
    %590 = vmatpush2.msra.mxu0 0.0
    %591 = vmatprep.subr.mxu0 0.0
    %592 = vmatpush2.msra.mxu0 0.0
    %593 = vmatprep.subr.mxu0 0.0
    %594 = vmatpush2.msra.mxu0 0.0
    %595 = vmatprep.subr.mxu0 0.0
    %596 = vmatpush2.msra.mxu0 0.0
    %597 = vmatprep.subr.mxu0 0.0
    %598 = vmatpush2.msra.mxu0 0.0
    %599 = vmatprep.subr.mxu0 0.0
    %600 = vmatpush2.msra.mxu0 0.0
    %601 = vmatprep.subr.mxu0 0.0
    %602 = vmatpush2.msra.mxu0 0.0
    %603 = vmatprep.subr.mxu0 0.0
    %604 = vmatpush2.msra.mxu0 0.0
    %605 = vmatprep.subr.mxu0 0.0
    %606 = vmatpush2.msra.mxu0 0.0
    %607 = vmatprep.subr.mxu0 0.0
    %608 = vmatpush2.msra.mxu0 0.0
    %609 = vmatprep.subr.mxu0 0.0
    %610 = vmatpush2.msra.mxu0 0.0
    %611 = vmatprep.subr.mxu0 0.0
    %612 = vmatpush2.msra.mxu0 0.0
    %613 = vmatprep.mubr.f32.mxu0 0.0
    %v614 = vand.u32 %v49, 4294901760
    %615 = vmatmul.mubr.f32.gmra.mxu0 %v614
    %v616 = vpop.f32.mrf.mxu0
    %v617 = vadd.f32 %v498, %v616
    %v618 = vpop.f32.mrf.mxu0
    %619 = vdwg.mxu0
    %620 = vmatprep.subr.mxu0 0.0
    %v621 = vand.u32 %v65, 4294901760
    %622 = vmatpush1.msra.mxu0 %v621
    %623 = vmatprep.subr.mxu0 0.0
    %v624 = vand.u32 %v64, 4294901760
    %625 = vmatpush1.msra.mxu0 %v624
    %626 = vmatprep.subr.mxu0 0.0
    %v627 = vand.u32 %v63, 4294901760
    %628 = vmatpush1.msra.mxu0 %v627
    %629 = vmatprep.subr.mxu0 0.0
    %v630 = vand.u32 %v62, 4294901760
    %631 = vmatpush1.msra.mxu0 %v630
    %632 = vmatprep.subr.mxu0 0.0
    %v633 = vand.u32 %v61, 4294901760
    %634 = vmatpush1.msra.mxu0 %v633
    %635 = vmatprep.subr.mxu0 0.0
    %v636 = vand.u32 %v60, 4294901760
    %637 = vmatpush1.msra.mxu0 %v636
    %638 = vmatprep.subr.mxu0 0.0
    %v639 = vand.u32 %v59, 4294901760
    %640 = vmatpush1.msra.mxu0 %v639
    %641 = vmatprep.subr.mxu0 0.0
    %v642 = vand.u32 %v58, 4294901760
    %643 = vmatpush1.msra.mxu0 %v642
    %644 = vmatprep.subr.mxu0 0.0
    %v645 = vand.u32 %v57, 4294901760
    %646 = vmatpush1.msra.mxu0 %v645
    %647 = vmatprep.subr.mxu0 0.0
    %v648 = vand.u32 %v56, 4294901760
    %649 = vmatpush1.msra.mxu0 %v648
    %650 = vmatprep.subr.mxu0 0.0
    %v651 = vand.u32 %v55, 4294901760
    %652 = vmatpush1.msra.mxu0 %v651
    %653 = vmatprep.subr.mxu0 0.0
    %v654 = vand.u32 %v54, 4294901760
    %655 = vmatpush1.msra.mxu0 %v654
    %656 = vmatprep.subr.mxu0 0.0
    %v657 = vand.u32 %v53, 4294901760
    %658 = vmatpush1.msra.mxu0 %v657
    %659 = vmatprep.subr.mxu0 0.0
    %v660 = vand.u32 %v52, 4294901760
    %661 = vmatpush1.msra.mxu0 %v660
    %662 = vmatprep.subr.mxu0 0.0
    %v663 = vand.u32 %v51, 4294901760
    %664 = vmatpush1.msra.mxu0 %v663
    %665 = vmatprep.subr.mxu0 0.0
    %v666 = vand.u32 %v50, 4294901760
    %667 = vmatpush1.msra.mxu0 %v666
    %668 = vmatprep.subr.mxu0 0.0
    %669 = vmatpush2.msra.mxu0 0.0
    %670 = vmatprep.subr.mxu0 0.0
    %671 = vmatpush2.msra.mxu0 0.0
    %672 = vmatprep.subr.mxu0 0.0
    %673 = vmatpush2.msra.mxu0 0.0
    %674 = vmatprep.subr.mxu0 0.0
    %675 = vmatpush2.msra.mxu0 0.0
    %676 = vmatprep.subr.mxu0 0.0
    %677 = vmatpush2.msra.mxu0 0.0
    %678 = vmatprep.subr.mxu0 0.0
    %679 = vmatpush2.msra.mxu0 0.0
    %680 = vmatprep.subr.mxu0 0.0
    %681 = vmatpush2.msra.mxu0 0.0
    %682 = vmatprep.subr.mxu0 0.0
    %683 = vmatpush2.msra.mxu0 0.0
    %684 = vmatprep.subr.mxu0 0.0
    %685 = vmatpush2.msra.mxu0 0.0
    %686 = vmatprep.subr.mxu0 0.0
    %687 = vmatpush2.msra.mxu0 0.0
    %688 = vmatprep.subr.mxu0 0.0
    %689 = vmatpush2.msra.mxu0 0.0
    %690 = vmatprep.subr.mxu0 0.0
    %691 = vmatpush2.msra.mxu0 0.0
    %692 = vmatprep.subr.mxu0 0.0
    %693 = vmatpush2.msra.mxu0 0.0
    %694 = vmatprep.subr.mxu0 0.0
    %695 = vmatpush2.msra.mxu0 0.0
    %696 = vmatprep.subr.mxu0 0.0
    %697 = vmatpush2.msra.mxu0 0.0
    %698 = vmatprep.subr.mxu0 0.0
    %699 = vmatpush2.msra.mxu0 0.0
    %700 = vmatprep.mubr.f32.mxu0 0.0
    %v701 = vand.u32 %v49, 4294901760
    %702 = vmatmul.mubr.f32.gmra.mxu0 %v701
    %v703 = vpop.f32.mrf.mxu0
    %v704 = vadd.f32 %v617, %v703
    %v705 = vpop.f32.mrf.mxu0
    %706 = vdwg.mxu0
    %707 = vst [vmem:[#allocation5] sm:$0xff] %v704
    // Predicated region
    $region14: #{tpu_custom_call.1} parent=1 // pred_check
      _
    $region15: #{tpu_custom_call.1} parent=1 // pred_check_branch
      %709 = sbr.rel (0) target = $region17
    $region16: #{tpu_custom_call.1} parent=1 // pred_region
      %s711 = ssub.s32 128, 128
      %712 = vsyncadd [#allocation4], %s711
      %s714 = sshll.u32 [#allocation5], 4
      %s715 = int_to_ptr.vmem [resolvable:$true] %s714
      %717 = dma.vmem_to_hbm [thread:$0]  %s715, 128, %s2, [#allocation4]
    $region17: #{tpu_custom_call.1} parent=1 // pred_fallthru
      _
    // Predicated region
    $region18: #{tpu_custom_call.1} parent=1 // pred_check
      _
    $region19: #{tpu_custom_call.1} parent=1 // pred_check_branch
      %719 = sbr.rel (0) target = $region21
    $region20: #{tpu_custom_call.1} parent=1 // pred_region
      %720 = dma.done [#allocation4], 128
    $region21: #{tpu_custom_call.1} parent=1 // pred_fallthru
      _
    %721 = vsyncpa [#allocation3], 1
    %722 = vsyncpa [#allocation4], 1

</llo_original>
